<compile_context>
chip_gen: v7x
topology: tpu7x:2x2x1
jax: 0.10.0
libtpu: 0.0.40
codegen_flags: <defaults>
</compile_context>

<pallas_src>
import functools

import jax
import jax.numpy as jnp
import numpy as np
from jax.experimental import pallas as pl
from jax.experimental.pallas import tpu as pltpu


def _round_up(x, m):
    return ((x + m - 1) // m) * m


# ------------------------------ fused kernel ------------------------------

def _fused_kernel(*refs, T, EXP, CRIT, D0, DBOT, n_exp_deep, n_cr_layers,
                  OUT_PAD):
    it = iter(refs)
    x_ref = next(it)          # (TB, F*E + N)           bf16
    tl_ref = next(it)         # (T, EXP+CRIT)           f32  (task logits)
    fw_ref = next(it)         # (F*E+N, EXP*D0+GATES)   bf16 (folded front W)
    fb_ref = next(it)         # (1, EXP*D0+GATES)       f32
    exp_deep = [(next(it), next(it)) for _ in range(n_exp_deep)]
    expand_ref = next(it)     # (EXP, EXP*DBOT)         f32  0/1
    sum_ref = next(it)        # (EXP*DBOT, DBOT)        f32  0/1
    cr_layers = [(next(it), next(it)) for _ in range(n_cr_layers)]
    o_ref = next(it)          # (TB, OUT_PAD)           f32

    x = x_ref[...]
    TB = x.shape[0]

    # One MXU pass: expert layer-0 pre-activations + gate base logits.
    front = jnp.dot(x, fw_ref[...],
                    preferred_element_type=jnp.float32) + fb_ref[...]
    h = jnp.maximum(front[:, :EXP * D0], 0.0)        # all experts, layer 0
    base_logits = front[:, EXP * D0:]                # (TB, EXP+CRIT)

    # Deeper expert layers: block-diagonal => all experts in one dot.
    for (w_ref, b_ref) in exp_deep:
        h = jnp.maximum(
            jnp.dot(h.astype(w_ref.dtype), w_ref[...],
                    preferred_element_type=jnp.float32) + b_ref[...], 0.0)
    # h: (TB, EXP*DBOT)

    # Stack the tasks along rows -> one softmax pair for everything.
    tl = tl_ref[...]
    logits = jnp.concatenate(
        [base_logits + tl[i:i + 1, :] for i in range(T)], axis=0)
    eg = jax.nn.softmax(logits[:, :EXP], axis=-1)    # (T*TB, EXP)   f32
    cg = jax.nn.softmax(logits[:, EXP:], axis=-1)    # (T*TB, CRIT)  f32

    # Expert mixture on the MXU: expand gates to lanes, multiply, reduce
    # over experts with a 0/1 summation matmul.
    h_tiled = jnp.concatenate([h] * T, axis=0)       # (T*TB, EXP*DBOT)
    eg_wide = jnp.dot(eg, expand_ref[...],
                      preferred_element_type=jnp.float32)
    mixed = jnp.dot(eg_wide * h_tiled, sum_ref[...],
                    preferred_element_type=jnp.float32)   # (T*TB, DBOT)

    # All critics, for all tasks, in one pass.
    c = mixed
    for li, (w_ref, b_ref) in enumerate(cr_layers):
        c = (jnp.dot(c.astype(w_ref.dtype), w_ref[...],
                     preferred_element_type=jnp.float32) + b_ref[...])
        if li < n_cr_layers - 1:
            c = jnp.maximum(c, 0.0)
    c = jax.nn.sigmoid(c)                            # (T*TB, CRIT)

    # Gated mean over critics -> one column per task, lane-padded.
    res = jnp.sum(cg * c, axis=1, keepdims=True) * (1.0 / CRIT)  # (T*TB, 1)
    cols = [res[i * TB:(i + 1) * TB, :] for i in range(T)]
    if OUT_PAD > T:
        cols.append(jnp.zeros((TB, OUT_PAD - T), jnp.float32))
    o_ref[...] = jnp.concatenate(cols, axis=1)


# --------------------------- parameter building ---------------------------

_BN_SCALE = 1.0 / np.sqrt(1.0 + 1e-5)  # eval BN w/ default running stats


def _xavier_uniform(key, shape):
    bound = float(np.sqrt(6.0 / (shape[0] + shape[1])))
    return jax.random.uniform(key, shape, jnp.float32, -bound, bound)


def _linear_params(key, fan_in, fan_out):
    k1, k2 = jax.random.split(key)
    bound = 1.0 / float(np.sqrt(fan_in))
    w = jax.random.uniform(k1, (fan_in, fan_out), jnp.float32, -bound, bound)
    b = jax.random.uniform(k2, (1, fan_out), jnp.float32, -bound, bound)
    return w, b


def build_params(key, cfg):
    field_dims = cfg["categorical_field_dims"]
    E = cfg["embed_dim"]
    num_emb_rows = int(sum(field_dims))
    keys = jax.random.split(key, 64)
    ki = iter(range(64))

    params = {}
    params["embedding"] = _xavier_uniform(keys[next(ki)], (num_emb_rows, E))
    params["offsets"] = jnp.asarray(
        np.concatenate([[0], np.cumsum(field_dims)[:-1]]).astype(np.int32))
    params["num_w"], params["num_b"] = _linear_params(
        keys[next(ki)], cfg["numerical_num"], E)
    params["task_embedding"] = jax.random.normal(
        keys[next(ki)], (cfg["task_num"], E), jnp.float32)
    params["expert_gate_w"], params["expert_gate_b"] = _linear_params(
        keys[next(ki)], 2 * E, cfg["expert_num"])
    params["critic_gate_w"], params["critic_gate_b"] = _linear_params(
        keys[next(ki)], 2 * E, cfg["critic_num"])

    embed_output_dim = (len(field_dims) + 1) * E

    # Experts: Linear+BN(folded)+ReLU per bottom dim, no output layer.
    experts = []
    for _ in range(cfg["expert_num"]):
        layers, din = [], embed_output_dim
        for dout in cfg["bottom_mlp_dims"]:
            w, b = _linear_params(keys[next(ki)], din, dout)
            layers.append((w * _BN_SCALE, b * _BN_SCALE))
            din = dout
        experts.append(layers)
    params["expert"] = experts

    # Critics: Linear+BN(folded)+ReLU per tower dim, then Linear(.,1).
    critics = []
    for _ in range(cfg["critic_num"]):
        layers, din = [], cfg["bottom_mlp_dims"][-1]
        for dout in cfg["tower_mlp_dims"]:
            w, b = _linear_params(keys[next(ki)], din, dout)
            layers.append((w * _BN_SCALE, b * _BN_SCALE))
            din = dout
        w_out, b_out = _linear_params(keys[next(ki)], din, 1)
        critics.append({"hidden": layers, "out": (w_out, b_out)})
    params["critic"] = critics
    return params


# ---------------------- weight packing for the fused kernel ----------------

def _block_diag(mats):
    rows = sum(m.shape[0] for m in mats)
    cols = sum(m.shape[1] for m in mats)
    out = jnp.zeros((rows, cols), mats[0].dtype)
    r = c = 0
    for m in mats:
        out = out.at[r:r + m.shape[0], c:c + m.shape[1]].set(m)
        r += m.shape[0]
        c += m.shape[1]
    return out


def _pack_parallel_mlp(branches):
    """branches: list (over parallel MLPs) of lists of (w, b).
    Layer 0 -> column concat (same input for every branch);
    deeper layers -> block-diagonal."""
    n_layers = len(branches[0])
    packed = []
    for k in range(n_layers):
        ws = [br[k][0] for br in branches]
        bs = [br[k][1] for br in branches]
        w = jnp.concatenate(ws, axis=1) if k == 0 else _block_diag(ws)
        b = jnp.concatenate(bs, axis=1)
        packed.append((w, b))
    return packed


def prepack(params, cfg):
    """One-time packing.  Folds numerical Linear, field mean and gate into a
    single front matmul, precomputes the task-embedding gate logits, builds
    block-diagonal deeper layers and the 0/1 expand/sum matrices."""
    F = len(cfg["categorical_field_dims"])
    E = cfg["embed_dim"]
    EXP = cfg["expert_num"]
    DBOT = cfg["bottom_mlp_dims"][-1]
    inv = 1.0 / (F + 1)

    num_w, num_b = params["num_w"], params["num_b"]

    # Column-concat of every expert's layer-0 (input = (F+1)*E flat emb).
    exp0_w = jnp.concatenate(
        [params["expert"][e][0][0] for e in range(EXP)], axis=1)
    exp0_b = jnp.concatenate(
        [params["expert"][e][0][1] for e in range(EXP)], axis=1)

    gate_w = jnp.concatenate(
        [params["expert_gate_w"], params["critic_gate_w"]], axis=1)
    gate_b = jnp.concatenate(
        [params["expert_gate_b"], params["critic_gate_b"]], axis=1)
    gw_task, gw_mean = gate_w[:E], gate_w[E:]

    # Expert layer-0, with the numerical Linear folded in.
    exp_cat = exp0_w[:F * E]                       # rows for cat_flat
    exp_num = num_w @ exp0_w[F * E:]               # rows for numerical_x
    exp_bias = exp0_b + num_b @ exp0_w[F * E:]

    # Gate base logits, with the 1/(F+1) field mean + numerical Linear folded.
    gate_cat = jnp.tile(gw_mean, (F, 1)) * inv
    gate_num = (num_w @ gw_mean) * inv
    gate_bias = gate_b + (num_b @ gw_mean) * inv

    front_w = jnp.concatenate(
        [jnp.concatenate([exp_cat, gate_cat], axis=1),
         jnp.concatenate([exp_num, gate_num], axis=1)], axis=0)
    front_b = jnp.concatenate([exp_bias, gate_bias], axis=1)

    # Task-embedding half of the gate logits is batch-independent.
    task_logits = params["task_embedding"] @ gw_task   # (T, EXP+CRIT)

    expert_deep = []
    for k in range(1, len(params["expert"][0])):
        w = _block_diag([params["expert"][e][k][0] for e in range(EXP)])
        b = jnp.concatenate(
            [params["expert"][e][k][1] for e in range(EXP)], axis=1)
        expert_deep.append((w.astype(jnp.bfloat16), b))

    expand = jnp.asarray(np.kron(np.eye(EXP), np.ones((1, DBOT))),
                         jnp.float32)               # (EXP, EXP*DBOT)
    sum_mat = jnp.asarray(np.kron(np.ones((EXP, 1)), np.eye(DBOT)),
                          jnp.float32)              # (EXP*DBOT, DBOT)

    critic_branches = [c["hidden"] + [c["out"]] for c in params["critic"]]
    critic_layers = [(w.astype(jnp.bfloat16), b)
                     for (w, b) in _pack_parallel_mlp(critic_branches)]

    return dict(
        embedding=params["embedding"], offsets=params["offsets"],
        front_w=front_w.astype(jnp.bfloat16), front_b=front_b,
        task_logits=task_logits,
        expert_deep=expert_deep, expand=expand, sum_mat=sum_mat,
        critic_layers=critic_layers)


# ------------------------------ forward pass ------------------------------

def _choose_batch_tile(B, max_tb=1024):
    """Batch tile: multiple of 16 (bf16 sublane packing), capped at max_tb,
    and aimed at >=2 grid steps when the batch allows (v7x megacore)."""
    if B <= 8:
        return _round_up(B, 8)
    half = -(-B // 2)
    return min(max_tb, _round_up(half, 16))


def _forward_impl(packed, categorical_x, numerical_x, *, cfg, max_tb=1024):
    F = len(cfg["categorical_field_dims"])
    E = cfg["embed_dim"]
    N = cfg["numerical_num"]
    T = cfg["task_num"]
    EXP = cfg["expert_num"]
    CRIT = cfg["critic_num"]
    D0 = cfg["bottom_mlp_dims"][0]
    DBOT = cfg["bottom_mlp_dims"][-1]
    B = categorical_x.shape[0]

    # Embedding lookup (JAX glue gather), single streamed bf16 input.
    idx = categorical_x + packed["offsets"][None, :]
    cat_flat = jnp.take(packed["embedding"], idx, axis=0).reshape(B, F * E)
    x = jnp.concatenate(
        [cat_flat, numerical_x.astype(jnp.float32)], axis=1
    ).astype(jnp.bfloat16)

    TB = _choose_batch_tile(B, max_tb)
    Bp = _round_up(B, TB)
    if Bp != B:
        x = jnp.pad(x, ((0, Bp - B), (0, 0)))
    grid = (Bp // TB,)

    OUT_PAD = _round_up(max(T, 8), 8)

    def wspec(arr):
        nd = arr.ndim
        return pl.BlockSpec(arr.shape, lambda i, _nd=nd: (0,) * _nd)

    inputs = [x, packed["task_logits"], packed["front_w"], packed["front_b"]]
    in_specs = [pl.BlockSpec((TB, F * E + N), lambda i: (i, 0)),
                wspec(packed["task_logits"]),
                wspec(packed["front_w"]), wspec(packed["front_b"])]
    for (w, b) in packed["expert_deep"]:
        inputs += [w, b]
        in_specs += [wspec(w), wspec(b)]
    inputs += [packed["expand"], packed["sum_mat"]]
    in_specs += [wspec(packed["expand"]), wspec(packed["sum_mat"])]
    for (w, b) in packed["critic_layers"]:
        inputs += [w, b]
        in_specs += [wspec(w), wspec(b)]

    kernel = functools.partial(
        _fused_kernel, T=T, EXP=EXP, CRIT=CRIT, D0=D0, DBOT=DBOT,
        n_exp_deep=len(packed["expert_deep"]),
        n_cr_layers=len(packed["critic_layers"]), OUT_PAD=OUT_PAD)

    # Footprint is <2 MiB at TB<=1024; no vmem_limit_bytes needed unless the
    # tile cap is raised well beyond 2048.
    out = pl.pallas_call(
        kernel,
        out_shape=jax.ShapeDtypeStruct((Bp, OUT_PAD), jnp.float32),
        grid=grid,
        in_specs=in_specs,
        out_specs=pl.BlockSpec((TB, OUT_PAD), lambda i: (i, 0)),
        compiler_params=pltpu.CompilerParams(
            dimension_semantics=("parallel",)),
    )(*inputs)

    return [out[:B, i] for i in range(T)]


def make_forward(params, cfg, max_tb=1024):
    """Packs weights once and returns a jitted forward(categorical, numerical)."""
    packed = prepack(params, cfg)
    return jax.jit(functools.partial(_forward_impl, packed, cfg=cfg,
                                     max_tb=max_tb))


# ------------------ pure-JAX reference for correctness check ---------------

def meta_heac_forward_ref(params, categorical_x, numerical_x, cfg):
    B = categorical_x.shape[0]
    E = cfg["embed_dim"]
    idx = categorical_x + params["offsets"][None, :]
    cat_emb = jnp.take(params["embedding"], idx, axis=0)
    num_emb = (numerical_x @ params["num_w"] + params["num_b"])[:, None, :]
    emb = jnp.concatenate([cat_emb, num_emb], axis=1)
    mean_emb = jnp.mean(emb, axis=1)
    gate_inputs = [
        jnp.concatenate(
            [jnp.broadcast_to(params["task_embedding"][i][None, :], (B, E)),
             mean_emb], axis=1)
        for i in range(cfg["task_num"])]
    emb_flat = emb.reshape(B, -1)
    eg = [jax.nn.softmax(gi @ params["expert_gate_w"] + params["expert_gate_b"], -1)
          for gi in gate_inputs]
    cg = [jax.nn.softmax(gi @ params["critic_gate_w"] + params["critic_gate_b"], -1)
          for gi in gate_inputs]
    fea_list = []
    for e in range(cfg["expert_num"]):
        h = emb_flat
        for (w, b) in params["expert"][e]:
            h = jnp.maximum(h @ w + b, 0.0)
        fea_list.append(h)
    fea = jnp.stack(fea_list, axis=1)
    results = []
    for i in range(cfg["task_num"]):
        task_fea = jnp.einsum("be,bed->bd", eg[i], fea)
        outs = []
        for j in range(cfg["critic_num"]):
            h = task_fea
            for (w, b) in params["critic"][j]["hidden"]:
                h = jnp.maximum(h @ w + b, 0.0)
            w, b = params["critic"][j]["out"]
            outs.append(jax.nn.sigmoid(h @ w + b))
        outs = jnp.concatenate(outs, axis=1)
        results.append(jnp.mean(cg[i] * outs, axis=1))
    return results


# ---------------------------------- main -----------------------------------

def _make_inputs(key, cfg, batch):
    field_dims = np.asarray(cfg["categorical_field_dims"], np.int32)
    kc, kn = jax.random.split(key)
    u = jax.random.uniform(kc, (batch, len(field_dims)))
    categorical_x = jnp.asarray(
        np.floor(np.asarray(u) * field_dims[None, :]).astype(np.int32))
    numerical_x = jax.random.normal(kn, (batch, cfg["numerical_num"]),
                                    jnp.float32)
    return categorical_x, numerical_x


if __name__ == "__main__":
    cfg = dict(
        categorical_field_dims=[7, 11, 13, 5],
        numerical_num=6,
        embed_dim=16,
        bottom_mlp_dims=(64, 32),
        tower_mlp_dims=(32, 16),
        task_num=2,
        expert_num=3,
        critic_num=2,
        dropout=0.2,  # unused in eval-mode forward
    )

    key = jax.random.PRNGKey(0)
    kp, kd1, kd2 = jax.random.split(key, 3)
    params = build_params(kp, cfg)

    forward = make_forward(params, cfg)   # prepack once, jit the forward

    # bf16 weights/activations (f32 accumulation) => loosened tolerances vs
    # the pure-f32 reference.
    for kd, batch in ((kd1, 8), (kd2, 200)):
        categorical_x, numerical_x = _make_inputs(kd, cfg, batch)
        outs = forward(categorical_x, numerical_x)
        outs = [jax.block_until_ready(o) for o in outs]
        refs = meta_heac_forward_ref(params, categorical_x, numerical_x, cfg)
        for o, r in zip(outs, refs):
            np.testing.assert_allclose(np.asarray(o), np.asarray(r),
                                       rtol=2e-2, atol=1e-2)

    print("KERNEL_OK")
</pallas_src>

<mosaic_0001>
module attributes {stable_mosaic.version = 11 : i64} {
  func.func @_fused_kernel(%arg0: i32, %arg1: memref<8x70xbf16, #tpu.memory_space<vmem>>, %arg2: memref<2x5xf32, #tpu.memory_space<vmem>>, %arg3: memref<70x197xbf16, #tpu.memory_space<vmem>>, %arg4: memref<1x197xf32, #tpu.memory_space<vmem>>, %arg5: memref<192x96xbf16, #tpu.memory_space<vmem>>, %arg6: memref<1x96xf32, #tpu.memory_space<vmem>>, %arg7: memref<3x96xf32, #tpu.memory_space<vmem>>, %arg8: memref<96x32xf32, #tpu.memory_space<vmem>>, %arg9: memref<32x64xbf16, #tpu.memory_space<vmem>>, %arg10: memref<1x64xf32, #tpu.memory_space<vmem>>, %arg11: memref<64x32xbf16, #tpu.memory_space<vmem>>, %arg12: memref<1x32xf32, #tpu.memory_space<vmem>>, %arg13: memref<32x2xbf16, #tpu.memory_space<vmem>>, %arg14: memref<1x2xf32, #tpu.memory_space<vmem>>, %arg15: memref<8x8xf32, #tpu.memory_space<vmem>>) attributes {dimension_semantics = [#tpu.dimension_semantics<parallel>], iteration_bounds = array<i64: 1>, scalar_prefetch = 0 : i64, scratch_operands = 0 : i64, tpu.core_type = #tpu.core_type<tc>, window_params = [{transform_indices = @transform_0, window_bounds = array<i64: 8, 70>}, {pipeline_mode = #tpu.pipeline_mode<synchronous>, transform_indices = @transform_1, window_bounds = array<i64: 2, 5>}, {pipeline_mode = #tpu.pipeline_mode<synchronous>, transform_indices = @transform_2, window_bounds = array<i64: 70, 197>}, {pipeline_mode = #tpu.pipeline_mode<synchronous>, transform_indices = @transform_3, window_bounds = array<i64: 1, 197>}, {pipeline_mode = #tpu.pipeline_mode<synchronous>, transform_indices = @transform_4, window_bounds = array<i64: 192, 96>}, {pipeline_mode = #tpu.pipeline_mode<synchronous>, transform_indices = @transform_5, window_bounds = array<i64: 1, 96>}, {pipeline_mode = #tpu.pipeline_mode<synchronous>, transform_indices = @transform_6, window_bounds = array<i64: 3, 96>}, {pipeline_mode = #tpu.pipeline_mode<synchronous>, transform_indices = @transform_7, window_bounds = array<i64: 96, 32>}, {pipeline_mode = #tpu.pipeline_mode<synchronous>, transform_indices = @transform_8, window_bounds = array<i64: 32, 64>}, {pipeline_mode = #tpu.pipeline_mode<synchronous>, transform_indices = @transform_9, window_bounds = array<i64: 1, 64>}, {pipeline_mode = #tpu.pipeline_mode<synchronous>, transform_indices = @transform_10, window_bounds = array<i64: 64, 32>}, {pipeline_mode = #tpu.pipeline_mode<synchronous>, transform_indices = @transform_11, window_bounds = array<i64: 1, 32>}, {pipeline_mode = #tpu.pipeline_mode<synchronous>, transform_indices = @transform_12, window_bounds = array<i64: 32, 2>}, {pipeline_mode = #tpu.pipeline_mode<synchronous>, transform_indices = @transform_13, window_bounds = array<i64: 1, 2>}, {transform_indices = @transform_14, window_bounds = array<i64: 8, 8>}]} {
    %c0 = arith.constant 0 : index
    %c0_0 = arith.constant 0 : index
    %0 = vector.load %arg1[%c0, %c0_0] : memref<8x70xbf16, #tpu.memory_space<vmem>>, vector<8x70xbf16>
    %c0_1 = arith.constant 0 : index
    %c0_2 = arith.constant 0 : index
    %1 = vector.load %arg3[%c0_1, %c0_2] : memref<70x197xbf16, #tpu.memory_space<vmem>>, vector<70x197xbf16>
    %cst = arith.constant dense<0.000000e+00> : vector<8x197xf32>
    %2 = tpu.matmul %0, %1, %cst {dimension_numbers = #tpu.dot_dimension_numbers<[1], [0], [0], [1], [0, 0, 1, 1], [], []>} : vector<8x70xbf16>, vector<70x197xbf16>, vector<8x197xf32> -> vector<8x197xf32>
    %c0_3 = arith.constant 0 : index
    %c0_4 = arith.constant 0 : index
    %3 = vector.load %arg4[%c0_3, %c0_4] : memref<1x197xf32, #tpu.memory_space<vmem>>, vector<1x197xf32>
    %4 = vector.broadcast %3 : vector<1x197xf32> to vector<8x197xf32>
    %5 = arith.addf %2, %4 : vector<8x197xf32>
    %6 = vector.extract_strided_slice %5 {offsets = [0, 0], sizes = [8, 192], strides = [1, 1]} : vector<8x197xf32> to vector<8x192xf32>
    %cst_5 = arith.constant 0.000000e+00 : f32
    %7 = vector.broadcast %cst_5 : f32 to vector<8x192xf32>
    %8 = arith.maximumf %6, %7 : vector<8x192xf32>
    %9 = vector.extract_strided_slice %5 {offsets = [0, 192], sizes = [8, 5], strides = [1, 1]} : vector<8x197xf32> to vector<8x5xf32>
    %10 = arith.truncf %8 : vector<8x192xf32> to vector<8x192xbf16>
    %c0_6 = arith.constant 0 : index
    %c0_7 = arith.constant 0 : index
    %11 = vector.load %arg5[%c0_6, %c0_7] : memref<192x96xbf16, #tpu.memory_space<vmem>>, vector<192x96xbf16>
    %cst_8 = arith.constant dense<0.000000e+00> : vector<8x96xf32>
    %12 = tpu.matmul %10, %11, %cst_8 {dimension_numbers = #tpu.dot_dimension_numbers<[1], [0], [0], [1], [0, 0, 1, 1], [], []>} : vector<8x192xbf16>, vector<192x96xbf16>, vector<8x96xf32> -> vector<8x96xf32>
    %c0_9 = arith.constant 0 : index
    %c0_10 = arith.constant 0 : index
    %13 = vector.load %arg6[%c0_9, %c0_10] : memref<1x96xf32, #tpu.memory_space<vmem>>, vector<1x96xf32>
    %14 = vector.broadcast %13 : vector<1x96xf32> to vector<8x96xf32>
    %15 = arith.addf %12, %14 : vector<8x96xf32>
    %cst_11 = arith.constant 0.000000e+00 : f32
    %16 = vector.broadcast %cst_11 : f32 to vector<8x96xf32>
    %17 = arith.maximumf %15, %16 : vector<8x96xf32>
    %c0_12 = arith.constant 0 : index
    %c0_13 = arith.constant 0 : index
    %18 = vector.load %arg2[%c0_12, %c0_13] : memref<2x5xf32, #tpu.memory_space<vmem>>, vector<2x5xf32>
    %19 = vector.extract_strided_slice %18 {offsets = [0, 0], sizes = [1, 5], strides = [1, 1]} : vector<2x5xf32> to vector<1x5xf32>
    %20 = vector.broadcast %19 : vector<1x5xf32> to vector<8x5xf32>
    %21 = arith.addf %9, %20 : vector<8x5xf32>
    %22 = vector.extract_strided_slice %18 {offsets = [1, 0], sizes = [1, 5], strides = [1, 1]} : vector<2x5xf32> to vector<1x5xf32>
    %23 = vector.broadcast %22 : vector<1x5xf32> to vector<8x5xf32>
    %24 = arith.addf %9, %23 : vector<8x5xf32>
    %25 = tpu.concatenate %21, %24 in 0 : vector<8x5xf32>, vector<8x5xf32> -> vector<16x5xf32>
    %26 = vector.extract_strided_slice %25 {offsets = [0, 0], sizes = [16, 3], strides = [1, 1]} : vector<16x5xf32> to vector<16x3xf32>
    %cst_14 = arith.constant dense<0xFF800000> : vector<16xf32>
    %27 = vector.multi_reduction <maximumf>, %26, %cst_14 [1] : vector<16x3xf32> to vector<16xf32>
    %cst_15 = arith.constant 0xFF800000 : f32
    %28 = vector.broadcast %cst_15 : f32 to vector<16xf32>
    %29 = arith.maximumf %28, %27 : vector<16xf32>
    %30 = vector.shape_cast %29 : vector<16xf32> to vector<16x1xf32>
    %31 = vector.broadcast %30 : vector<16x1xf32> to vector<16x3xf32>
    %32 = arith.subf %26, %31 : vector<16x3xf32>
    %33 = math.exp %32 : vector<16x3xf32>
    %cst_16 = arith.constant dense<0.000000e+00> : vector<16xf32>
    %34 = vector.multi_reduction <add>, %33, %cst_16 [1] : vector<16x3xf32> to vector<16xf32>
    %35 = vector.shape_cast %34 : vector<16xf32> to vector<16x1xf32>
    %36 = vector.broadcast %35 : vector<16x1xf32> to vector<16x3xf32>
    %37 = arith.divf %33, %36 : vector<16x3xf32>
    %38 = vector.extract_strided_slice %25 {offsets = [0, 3], sizes = [16, 2], strides = [1, 1]} : vector<16x5xf32> to vector<16x2xf32>
    %cst_17 = arith.constant dense<0xFF800000> : vector<16xf32>
    %39 = vector.multi_reduction <maximumf>, %38, %cst_17 [1] : vector<16x2xf32> to vector<16xf32>
    %cst_18 = arith.constant 0xFF800000 : f32
    %40 = vector.broadcast %cst_18 : f32 to vector<16xf32>
    %41 = arith.maximumf %40, %39 : vector<16xf32>
    %42 = vector.shape_cast %41 : vector<16xf32> to vector<16x1xf32>
    %43 = vector.broadcast %42 : vector<16x1xf32> to vector<16x2xf32>
    %44 = arith.subf %38, %43 : vector<16x2xf32>
    %45 = math.exp %44 : vector<16x2xf32>
    %cst_19 = arith.constant dense<0.000000e+00> : vector<16xf32>
    %46 = vector.multi_reduction <add>, %45, %cst_19 [1] : vector<16x2xf32> to vector<16xf32>
    %47 = vector.shape_cast %46 : vector<16xf32> to vector<16x1xf32>
    %48 = vector.broadcast %47 : vector<16x1xf32> to vector<16x2xf32>
    %49 = arith.divf %45, %48 : vector<16x2xf32>
    %50 = tpu.concatenate %17, %17 in 0 : vector<8x96xf32>, vector<8x96xf32> -> vector<16x96xf32>
    %c0_20 = arith.constant 0 : index
    %c0_21 = arith.constant 0 : index
    %51 = vector.load %arg7[%c0_20, %c0_21] : memref<3x96xf32, #tpu.memory_space<vmem>>, vector<3x96xf32>
    %cst_22 = arith.constant dense<0.000000e+00> : vector<16x96xf32>
    %52 = tpu.matmul %37, %51, %cst_22 {dimension_numbers = #tpu.dot_dimension_numbers<[1], [0], [0], [1], [0, 0, 1, 1], [], []>} : vector<16x3xf32>, vector<3x96xf32>, vector<16x96xf32> -> vector<16x96xf32>
    %53 = arith.mulf %52, %50 : vector<16x96xf32>
    %c0_23 = arith.constant 0 : index
    %c0_24 = arith.constant 0 : index
    %54 = vector.load %arg8[%c0_23, %c0_24] : memref<96x32xf32, #tpu.memory_space<vmem>>, vector<96x32xf32>
    %cst_25 = arith.constant dense<0.000000e+00> : vector<16x32xf32>
    %55 = tpu.matmul %53, %54, %cst_25 {dimension_numbers = #tpu.dot_dimension_numbers<[1], [0], [0], [1], [0, 0, 1, 1], [], []>} : vector<16x96xf32>, vector<96x32xf32>, vector<16x32xf32> -> vector<16x32xf32>
    %56 = arith.truncf %55 : vector<16x32xf32> to vector<16x32xbf16>
    %c0_26 = arith.constant 0 : index
    %c0_27 = arith.constant 0 : index
    %57 = vector.load %arg9[%c0_26, %c0_27] : memref<32x64xbf16, #tpu.memory_space<vmem>>, vector<32x64xbf16>
    %cst_28 = arith.constant dense<0.000000e+00> : vector<16x64xf32>
    %58 = tpu.matmul %56, %57, %cst_28 {dimension_numbers = #tpu.dot_dimension_numbers<[1], [0], [0], [1], [0, 0, 1, 1], [], []>} : vector<16x32xbf16>, vector<32x64xbf16>, vector<16x64xf32> -> vector<16x64xf32>
    %c0_29 = arith.constant 0 : index
    %c0_30 = arith.constant 0 : index
    %59 = vector.load %arg10[%c0_29, %c0_30] : memref<1x64xf32, #tpu.memory_space<vmem>>, vector<1x64xf32>
    %60 = vector.broadcast %59 : vector<1x64xf32> to vector<16x64xf32>
    %61 = arith.addf %58, %60 : vector<16x64xf32>
    %cst_31 = arith.constant 0.000000e+00 : f32
    %62 = vector.broadcast %cst_31 : f32 to vector<16x64xf32>
    %63 = arith.maximumf %61, %62 : vector<16x64xf32>
    %64 = arith.truncf %63 : vector<16x64xf32> to vector<16x64xbf16>
    %c0_32 = arith.constant 0 : index
    %c0_33 = arith.constant 0 : index
    %65 = vector.load %arg11[%c0_32, %c0_33] : memref<64x32xbf16, #tpu.memory_space<vmem>>, vector<64x32xbf16>
    %cst_34 = arith.constant dense<0.000000e+00> : vector<16x32xf32>
    %66 = tpu.matmul %64, %65, %cst_34 {dimension_numbers = #tpu.dot_dimension_numbers<[1], [0], [0], [1], [0, 0, 1, 1], [], []>} : vector<16x64xbf16>, vector<64x32xbf16>, vector<16x32xf32> -> vector<16x32xf32>
    %c0_35 = arith.constant 0 : index
    %c0_36 = arith.constant 0 : index
    %67 = vector.load %arg12[%c0_35, %c0_36] : memref<1x32xf32, #tpu.memory_space<vmem>>, vector<1x32xf32>
    %68 = vector.broadcast %67 : vector<1x32xf32> to vector<16x32xf32>
    %69 = arith.addf %66, %68 : vector<16x32xf32>
    %cst_37 = arith.constant 0.000000e+00 : f32
    %70 = vector.broadcast %cst_37 : f32 to vector<16x32xf32>
    %71 = arith.maximumf %69, %70 : vector<16x32xf32>
    %72 = arith.truncf %71 : vector<16x32xf32> to vector<16x32xbf16>
    %c0_38 = arith.constant 0 : index
    %c0_39 = arith.constant 0 : index
    %73 = vector.load %arg13[%c0_38, %c0_39] : memref<32x2xbf16, #tpu.memory_space<vmem>>, vector<32x2xbf16>
    %cst_40 = arith.constant dense<0.000000e+00> : vector<16x2xf32>
    %74 = tpu.matmul %72, %73, %cst_40 {dimension_numbers = #tpu.dot_dimension_numbers<[1], [0], [0], [1], [0, 0, 1, 1], [], []>} : vector<16x32xbf16>, vector<32x2xbf16>, vector<16x2xf32> -> vector<16x2xf32>
    %c0_41 = arith.constant 0 : index
    %c0_42 = arith.constant 0 : index
    %75 = vector.load %arg14[%c0_41, %c0_42] : memref<1x2xf32, #tpu.memory_space<vmem>>, vector<1x2xf32>
    %76 = vector.broadcast %75 : vector<1x2xf32> to vector<16x2xf32>
    %77 = arith.addf %74, %76 : vector<16x2xf32>
    %78 = arith.negf %77 : vector<16x2xf32>
    %79 = math.exp %78 : vector<16x2xf32>
    %cst_43 = arith.constant 1.000000e+00 : f32
    %80 = vector.broadcast %cst_43 : f32 to vector<16x2xf32>
    %81 = arith.addf %80, %79 : vector<16x2xf32>
    %82 = arith.divf %80, %81 : vector<16x2xf32>
    %83 = arith.mulf %49, %82 : vector<16x2xf32>
    %cst_44 = arith.constant dense<0.000000e+00> : vector<16xf32>
    %84 = vector.multi_reduction <add>, %83, %cst_44 [1] : vector<16x2xf32> to vector<16xf32>
    %85 = vector.shape_cast %84 : vector<16xf32> to vector<16x1xf32>
    %cst_45 = arith.constant 5.000000e-01 : f32
    %86 = vector.broadcast %cst_45 : f32 to vector<16x1xf32>
    %87 = arith.mulf %85, %86 : vector<16x1xf32>
    %88 = vector.extract_strided_slice %87 {offsets = [0, 0], sizes = [8, 1], strides = [1, 1]} : vector<16x1xf32> to vector<8x1xf32>
    %89 = vector.extract_strided_slice %87 {offsets = [8, 0], sizes = [8, 1], strides = [1, 1]} : vector<16x1xf32> to vector<8x1xf32>
    %cst_46 = arith.constant 0.000000e+00 : f32
    %90 = vector.broadcast %cst_46 : f32 to vector<8x6xf32>
    %91 = tpu.concatenate %88, %89, %90 in 1 : vector<8x1xf32>, vector<8x1xf32>, vector<8x6xf32> -> vector<8x8xf32>
    %c0_47 = arith.constant 0 : index
    %c0_48 = arith.constant 0 : index
    %92 = vector.load %arg15[%c0_47, %c0_48] : memref<8x8xf32, #tpu.memory_space<vmem>>, vector<8x8xf32>
    tpu.vector_store %arg15[%c0_47, %c0_48], %91 {strides = array<i32>} : memref<8x8xf32, #tpu.memory_space<vmem>>, vector<8x8xf32>,
    return
  }
  func.func @transform_0(%arg0: i32) -> (i32, i32) {
    %c0_i32 = arith.constant 0 : i32
    %c0_i32_0 = arith.constant 0 : i32
    return %arg0, %c0_i32 : i32, i32
  }
  func.func @transform_1(%arg0: i32) -> (i32, i32) {
    %c0_i32 = arith.constant 0 : i32
    %c0_i32_0 = arith.constant 0 : i32
    %c0_i32_1 = arith.constant 0 : i32
    return %c0_i32, %c0_i32_0 : i32, i32
  }
  func.func @transform_2(%arg0: i32) -> (i32, i32) {
    %c0_i32 = arith.constant 0 : i32
    %c0_i32_0 = arith.constant 0 : i32
    %c0_i32_1 = arith.constant 0 : i32
    return %c0_i32, %c0_i32_0 : i32, i32
  }
  func.func @transform_3(%arg0: i32) -> (i32, i32) {
    %c0_i32 = arith.constant 0 : i32
    %c0_i32_0 = arith.constant 0 : i32
    %c0_i32_1 = arith.constant 0 : i32
    return %c0_i32, %c0_i32_0 : i32, i32
  }
  func.func @transform_4(%arg0: i32) -> (i32, i32) {
    %c0_i32 = arith.constant 0 : i32
    %c0_i32_0 = arith.constant 0 : i32
    %c0_i32_1 = arith.constant 0 : i32
    return %c0_i32, %c0_i32_0 : i32, i32
  }
  func.func @transform_5(%arg0: i32) -> (i32, i32) {
    %c0_i32 = arith.constant 0 : i32
    %c0_i32_0 = arith.constant 0 : i32
    %c0_i32_1 = arith.constant 0 : i32
    return %c0_i32, %c0_i32_0 : i32, i32
  }
  func.func @transform_6(%arg0: i32) -> (i32, i32) {
    %c0_i32 = arith.constant 0 : i32
    %c0_i32_0 = arith.constant 0 : i32
    %c0_i32_1 = arith.constant 0 : i32
    return %c0_i32, %c0_i32_0 : i32, i32
  }
  func.func @transform_7(%arg0: i32) -> (i32, i32) {
    %c0_i32 = arith.constant 0 : i32
    %c0_i32_0 = arith.constant 0 : i32
    %c0_i32_1 = arith.constant 0 : i32
    return %c0_i32, %c0_i32_0 : i32, i32
  }
  func.func @transform_8(%arg0: i32) -> (i32, i32) {
    %c0_i32 = arith.constant 0 : i32
    %c0_i32_0 = arith.constant 0 : i32
    %c0_i32_1 = arith.constant 0 : i32
    return %c0_i32, %c0_i32_0 : i32, i32
  }
  func.func @transform_9(%arg0: i32) -> (i32, i32) {
    %c0_i32 = arith.constant 0 : i32
    %c0_i32_0 = arith.constant 0 : i32
    %c0_i32_1 = arith.constant 0 : i32
    return %c0_i32, %c0_i32_0 : i32, i32
  }
  func.func @transform_10(%arg0: i32) -> (i32, i32) {
    %c0_i32 = arith.constant 0 : i32
    %c0_i32_0 = arith.constant 0 : i32
    %c0_i32_1 = arith.constant 0 : i32
    return %c0_i32, %c0_i32_0 : i32, i32
  }
  func.func @transform_11(%arg0: i32) -> (i32, i32) {
    %c0_i32 = arith.constant 0 : i32
    %c0_i32_0 = arith.constant 0 : i32
    %c0_i32_1 = arith.constant 0 : i32
    return %c0_i32, %c0_i32_0 : i32, i32
  }
  func.func @transform_12(%arg0: i32) -> (i32, i32) {
    %c0_i32 = arith.constant 0 : i32
    %c0_i32_0 = arith.constant 0 : i32
    %c0_i32_1 = arith.constant 0 : i32
    return %c0_i32, %c0_i32_0 : i32, i32
  }
  func.func @transform_13(%arg0: i32) -> (i32, i32) {
    %c0_i32 = arith.constant 0 : i32
    %c0_i32_0 = arith.constant 0 : i32
    %c0_i32_1 = arith.constant 0 : i32
    return %c0_i32, %c0_i32_0 : i32, i32
  }
  func.func @transform_14(%arg0: i32) -> (i32, i32) {
    %c0_i32 = arith.constant 0 : i32
    %c0_i32_0 = arith.constant 0 : i32
    return %arg0, %c0_i32 : i32, i32
  }
}

</mosaic_0001>

<llo_original>
// kernel: _forward_impl.1
$region0: #{_forward_impl.1}
  #allocation0 [shape = 'u32[]', space=smem, size = 0x4, offset = 0x4, fixed_abs, tag = 'smem constant byte address 0x4 - core index']
  #allocation1 [shape = 'u32[144,128]{1,0:T(1,128)}', space=vmem, size = 0x12000, scoped, tag = 'internal scratch']
  %s0 = inlined_call_operand.vmem [shape: bf16[8,70], index: 0, kind: input, shape index: {}]
  %s1 = inlined_call_operand.vmem [shape: f32[2,5], index: 1, kind: input, shape index: {}]
  %s2 = inlined_call_operand.vmem [shape: bf16[70,197], index: 2, kind: input, shape index: {}]
  %s3 = inlined_call_operand.hbm [shape: f32[1,197], index: 3, kind: input, shape index: {}]
  %s4 = inlined_call_operand.vmem [shape: bf16[192,96], index: 4, kind: input, shape index: {}]
  %s5 = inlined_call_operand.hbm [shape: f32[1,96], index: 5, kind: input, shape index: {}]
  %s6 = inlined_call_operand.hbm [shape: f32[3,96], index: 6, kind: input, shape index: {}]
  %s7 = inlined_call_operand.vmem [shape: f32[96,32], index: 7, kind: input, shape index: {}]
  %s8 = inlined_call_operand.vmem [shape: bf16[32,64], index: 8, kind: input, shape index: {}]
  %s9 = inlined_call_operand.hbm [shape: f32[1,64], index: 9, kind: input, shape index: {}]
  %s10 = inlined_call_operand.vmem [shape: bf16[64,32], index: 10, kind: input, shape index: {}]
  %s11 = inlined_call_operand.hbm [shape: f32[1,32], index: 11, kind: input, shape index: {}]
  %s12 = inlined_call_operand.hbm [shape: bf16[32,2], index: 12, kind: input, shape index: {}]
  %s13 = inlined_call_operand.hbm [shape: f32[1,2], index: 13, kind: input, shape index: {}]
  %s14 = inlined_call_operand.vmem [shape: f32[8,8], index: 14, kind: output, shape index: {}]
  %s15 = sld [smem:[#allocation0]]
  $region94: #{_forward_impl.1} parent=0
    _
  %s17 = ssub.s32 1, %s15
  %s18 = scalar_select 0, %s17, %s15
  $region1: #{_forward_impl.1} parent=0
    #allocation2 [shape = 'u8[1024]{0}', space=vmem, size = 0x400, scoped, tag = 'input window, operand 3, single buffered']
    #allocation3 [shape = 's32[1]{0}', space=sflag, size = 0x4, scoped, tag = 'scoped memory for _forward_impl.1']
    #allocation4 [shape = 'u8[512]{0}', space=vmem, size = 0x400, scoped, tag = 'input window, operand 5, single buffered']
    #allocation5 [shape = 's32[1]{0}', space=sflag, size = 0x4, scoped, tag = 'scoped memory for _forward_impl.1']
    #allocation6 [shape = 'u8[2048]{0}', space=vmem, size = 0x800, scoped, tag = 'input window, operand 6, single buffered']
    #allocation7 [shape = 'u8[512]{0}', space=vmem, size = 0x400, scoped, tag = 'input window, operand 9, single buffered']
    #allocation8 [shape = 's32[1]{0}', space=sflag, size = 0x4, scoped, tag = 'scoped memory for _forward_impl.1']
    #allocation9 [shape = 'u8[512]{0}', space=vmem, size = 0x400, scoped, tag = 'input window, operand 11, single buffered']
    #allocation10 [shape = 'u8[8192]{0}', space=vmem, size = 0x2000, scoped, tag = 'input window, operand 12, single buffered']
    #allocation11 [shape = 's32[1]{0}', space=sflag, size = 0x4, scoped, tag = 'scoped memory for _forward_impl.1']
    #allocation12 [shape = 'u8[512]{0}', space=vmem, size = 0x400, scoped, tag = 'input window, operand 13, single buffered']
    %19 = vsyncpa [#allocation3], 0
    %20 = vsyncpa [#allocation5], 0
    %21 = vsyncpa [#allocation8], 0
    %22 = vsyncpa [#allocation11], 0
    // Predicated region
    $region2: #{_forward_impl.1} parent=1 // pred_check
      _
    $region3: #{_forward_impl.1} parent=1 // pred_check_branch
      %24 = sbr.rel (0) target = $region5
    $region4: #{_forward_impl.1} parent=1 // pred_region
      _
    $region5: #{_forward_impl.1} parent=1 // pred_fallthru
      _
    // Predicated region
    $region6: #{_forward_impl.1} parent=1 // pred_check
      _
    $region7: #{_forward_impl.1} parent=1 // pred_check_branch
      %26 = sbr.rel (0) target = $region9
    $region8: #{_forward_impl.1} parent=1 // pred_region
      _
    $region9: #{_forward_impl.1} parent=1 // pred_fallthru
      _
    // Predicated region
    $region10: #{_forward_impl.1} parent=1 // pred_check
      _
    $region11: #{_forward_impl.1} parent=1 // pred_check_branch
      %28 = sbr.rel (0) target = $region13
    $region12: #{_forward_impl.1} parent=1 // pred_region
      _
    $region13: #{_forward_impl.1} parent=1 // pred_fallthru
      _
    // Predicated region
    $region14: #{_forward_impl.1} parent=1 // pred_check
      _
    $region15: #{_forward_impl.1} parent=1 // pred_check_branch
      %30 = sbr.rel (0) target = $region17
    $region16: #{_forward_impl.1} parent=1 // pred_region
      %s32 = ssub.s32 32, 32
      %33 = vsyncadd [#allocation3], %s32
      %s35 = sshll.u32 [#allocation2], 4
      %s36 = int_to_ptr.vmem [resolvable:$true] %s35
      %38 = dma.hbm_to_vmem [thread:$0]  %s3, 32, %s36, [#allocation3]
    $region17: #{_forward_impl.1} parent=1 // pred_fallthru
      _
    // Predicated region
    $region18: #{_forward_impl.1} parent=1 // pred_check
      _
    $region19: #{_forward_impl.1} parent=1 // pred_check_branch
      %40 = sbr.rel (0) target = $region21
    $region20: #{_forward_impl.1} parent=1 // pred_region
      _
    $region21: #{_forward_impl.1} parent=1 // pred_fallthru
      _
    // Predicated region
    $region22: #{_forward_impl.1} parent=1 // pred_check
      _
    $region23: #{_forward_impl.1} parent=1 // pred_check_branch
      %42 = sbr.rel (0) target = $region25
    $region24: #{_forward_impl.1} parent=1 // pred_region
      %s44 = ssub.s32 16, 16
      %45 = vsyncadd [#allocation5], %s44
      %s47 = sshll.u32 [#allocation4], 4
      %s48 = int_to_ptr.vmem [resolvable:$true] %s47
      %50 = dma.hbm_to_vmem [thread:$0]  %s5, 16, %s48, [#allocation5]
    $region25: #{_forward_impl.1} parent=1 // pred_fallthru
      _
    // Predicated region
    $region26: #{_forward_impl.1} parent=1 // pred_check
      _
    $region27: #{_forward_impl.1} parent=1 // pred_check_branch
      %52 = sbr.rel (0) target = $region29
    $region28: #{_forward_impl.1} parent=1 // pred_region
      %s54 = ssub.s32 64, 64
      %55 = vsyncadd [#allocation5], %s54
      %s57 = sshll.u32 [#allocation6], 4
      %s58 = int_to_ptr.vmem [resolvable:$true] %s57
      %60 = dma.hbm_to_vmem [thread:$0]  %s6, 64, %s58, [#allocation5]
    $region29: #{_forward_impl.1} parent=1 // pred_fallthru
      _
    // Predicated region
    $region30: #{_forward_impl.1} parent=1 // pred_check
      _
    $region31: #{_forward_impl.1} parent=1 // pred_check_branch
      %62 = sbr.rel (0) target = $region33
    $region32: #{_forward_impl.1} parent=1 // pred_region
      _
    $region33: #{_forward_impl.1} parent=1 // pred_fallthru
      _
    // Predicated region
    $region34: #{_forward_impl.1} parent=1 // pred_check
      _
    $region35: #{_forward_impl.1} parent=1 // pred_check_branch
      %64 = sbr.rel (0) target = $region37
    $region36: #{_forward_impl.1} parent=1 // pred_region
      _
    $region37: #{_forward_impl.1} parent=1 // pred_fallthru
      _
    // Predicated region
    $region38: #{_forward_impl.1} parent=1 // pred_check
      _
    $region39: #{_forward_impl.1} parent=1 // pred_check_branch
      %66 = sbr.rel (0) target = $region41
    $region40: #{_forward_impl.1} parent=1 // pred_region
      %s68 = ssub.s32 16, 16
      %69 = vsyncadd [#allocation8], %s68
      %s71 = sshll.u32 [#allocation7], 4
      %s72 = int_to_ptr.vmem [resolvable:$true] %s71
      %74 = dma.hbm_to_vmem [thread:$0]  %s9, 16, %s72, [#allocation8]
    $region41: #{_forward_impl.1} parent=1 // pred_fallthru
      _
    // Predicated region
    $region42: #{_forward_impl.1} parent=1 // pred_check
      _
    $region43: #{_forward_impl.1} parent=1 // pred_check_branch
      %76 = sbr.rel (0) target = $region45
    $region44: #{_forward_impl.1} parent=1 // pred_region
      _
    $region45: #{_forward_impl.1} parent=1 // pred_fallthru
      _
    // Predicated region
    $region46: #{_forward_impl.1} parent=1 // pred_check
      _
    $region47: #{_forward_impl.1} parent=1 // pred_check_branch
      %78 = sbr.rel (0) target = $region49
    $region48: #{_forward_impl.1} parent=1 // pred_region
      %s80 = ssub.s32 16, 16
      %81 = vsyncadd [#allocation8], %s80
      %s83 = sshll.u32 [#allocation9], 4
      %s84 = int_to_ptr.vmem [resolvable:$true] %s83
      %86 = dma.hbm_to_vmem [thread:$0]  %s11, 16, %s84, [#allocation8]
    $region49: #{_forward_impl.1} parent=1 // pred_fallthru
      _
    // Predicated region
    $region50: #{_forward_impl.1} parent=1 // pred_check
      _
    $region51: #{_forward_impl.1} parent=1 // pred_check_branch
      %88 = sbr.rel (0) target = $region53
    $region52: #{_forward_impl.1} parent=1 // pred_region
      %s90 = ssub.s32 256, 256
      %91 = vsyncadd [#allocation11], %s90
      %s92 = sshll.u32 [#allocation10], 4
      %s93 = int_to_ptr.vmem [resolvable:$true] %s92
      %98 = dma.hbm_to_vmem [thread:$0]  %s12, 256, %s93, [#allocation11], 64, 64, 4
    $region53: #{_forward_impl.1} parent=1 // pred_fallthru
      _
    // Predicated region
    $region54: #{_forward_impl.1} parent=1 // pred_check
      _
    $region55: #{_forward_impl.1} parent=1 // pred_check_branch
      %100 = sbr.rel (0) target = $region57
    $region56: #{_forward_impl.1} parent=1 // pred_region
      %s102 = ssub.s32 16, 16
      %103 = vsyncadd [#allocation11], %s102
      %s105 = sshll.u32 [#allocation12], 4
      %s106 = int_to_ptr.vmem [resolvable:$true] %s105
      %108 = dma.hbm_to_vmem [thread:$0]  %s13, 16, %s106, [#allocation11]
    $region57: #{_forward_impl.1} parent=1 // pred_fallthru
      _
    // Predicated region
    $region58: #{_forward_impl.1} parent=1 // pred_check
      _
    $region59: #{_forward_impl.1} parent=1 // pred_check_branch
      %110 = sbr.rel (0) target = $region61
    $region60: #{_forward_impl.1} parent=1 // pred_region
      %111 = dma.done [#allocation3], 32
    $region61: #{_forward_impl.1} parent=1 // pred_fallthru
      _
    // Predicated region
    $region62: #{_forward_impl.1} parent=1 // pred_check
      _
    $region63: #{_forward_impl.1} parent=1 // pred_check_branch
      %113 = sbr.rel (0) target = $region65
    $region64: #{_forward_impl.1} parent=1 // pred_region
      %114 = dma.done [#allocation5], 16
    $region65: #{_forward_impl.1} parent=1 // pred_fallthru
      _
    // Predicated region
    $region66: #{_forward_impl.1} parent=1 // pred_check
      _
    $region67: #{_forward_impl.1} parent=1 // pred_check_branch
      %116 = sbr.rel (0) target = $region69
    $region68: #{_forward_impl.1} parent=1 // pred_region
      %117 = dma.done [#allocation5], 64
    $region69: #{_forward_impl.1} parent=1 // pred_fallthru
      _
    // Predicated region
    $region70: #{_forward_impl.1} parent=1 // pred_check
      _
    $region71: #{_forward_impl.1} parent=1 // pred_check_branch
      %119 = sbr.rel (0) target = $region73
    $region72: #{_forward_impl.1} parent=1 // pred_region
      %120 = dma.done [#allocation8], 16
    $region73: #{_forward_impl.1} parent=1 // pred_fallthru
      _
    // Predicated region
    $region74: #{_forward_impl.1} parent=1 // pred_check
      _
    $region75: #{_forward_impl.1} parent=1 // pred_check_branch
      %122 = sbr.rel (0) target = $region77
    $region76: #{_forward_impl.1} parent=1 // pred_region
      %123 = dma.done [#allocation8], 16
    $region77: #{_forward_impl.1} parent=1 // pred_fallthru
      _
    // Predicated region
    $region78: #{_forward_impl.1} parent=1 // pred_check
      _
    $region79: #{_forward_impl.1} parent=1 // pred_check_branch
      %125 = sbr.rel (0) target = $region81
    $region80: #{_forward_impl.1} parent=1 // pred_region
      %126 = dma.done [#allocation11], 256
    $region81: #{_forward_impl.1} parent=1 // pred_fallthru
      _
    // Predicated region
    $region82: #{_forward_impl.1} parent=1 // pred_check
      _
    $region83: #{_forward_impl.1} parent=1 // pred_check_branch
      %128 = sbr.rel (0) target = $region85
    $region84: #{_forward_impl.1} parent=1 // pred_region
      %129 = dma.done [#allocation11], 16
    $region85: #{_forward_impl.1} parent=1 // pred_fallthru
      _
    %v131 = vld [vmem:[%s0] sm:$0xf]
    %v132 = vld [vmem:[%s2] sm:$0xff]
    %v133 = vld [vmem:[%s2 + $0x8] sm:$0xff]
    %v134 = vld [vmem:[%s2 + $0x10] sm:$0xff]
    %v135 = vld [vmem:[%s2 + $0x18] sm:$0xff]
    %v136 = vld [vmem:[%s2 + $0x20] sm:$0xff]
    %v137 = vld [vmem:[%s2 + $0x28] sm:$0xff]
    %v138 = vld [vmem:[%s2 + $0x30] sm:$0xff]
    %v139 = vld [vmem:[%s2 + $0x38] sm:$0xff]
    %v140 = vld [vmem:[%s2 + $0x40] sm:$0x77]
    %v141 = vld [vmem:[#allocation2] sm:$0x3]
    %v143 = vlaneseq
    %v144 = vshrl.u32 %v143, 7
    %v145 = vsub.s32 0, %v144
    %v146 = vrot.slane %v141, %v145
    %v147 = vlaneseq
    %v148 = vshrl.u32 %v147, 7
    %v149 = vsub.s32 1, %v148
    %v150 = vrot.slane %v141, %v149
    %v162 = vunpack.c.l.b16 %v132
    %v163 = vunpack.c.h.b16 %v132
    %v164 = vunpack.c.l.b16 %v133
    %v165 = vunpack.c.h.b16 %v133
    %v166 = vunpack.c.l.b16 %v134
    %v167 = vunpack.c.h.b16 %v134
    %v168 = vunpack.c.l.b16 %v135
    %v169 = vunpack.c.h.b16 %v135
    %v170 = vunpack.c.l.b16 %v136
    %v171 = vunpack.c.h.b16 %v136
    %v172 = vunpack.c.l.b16 %v137
    %v173 = vunpack.c.h.b16 %v137
    %v174 = vunpack.c.l.b16 %v138
    %v175 = vunpack.c.h.b16 %v138
    %v176 = vunpack.c.l.b16 %v139
    %v177 = vunpack.c.h.b16 %v139
    %v178 = vunpack.c.l.b16 %v140
    %v179 = vunpack.c.h.b16 %v140
    %v180 = vpack.c.b16 %v164, %v162
    %v181 = vpack.c.b16 %v165, %v163
    %v182 = vpack.c.b16 %v168, %v166
    %v183 = vpack.c.b16 %v169, %v167
    %v184 = vpack.c.b16 %v172, %v170
    %v185 = vpack.c.b16 %v173, %v171
    %v186 = vpack.c.b16 %v176, %v174
    %v187 = vpack.c.b16 %v177, %v175
    %v188 = vpack.c.b16 %v178, %v178
    %v189 = vpack.c.b16 %v179, %v179
    %vm198 = vcmask 572416
    %v200 = vsel %vm198, %v131, 0
    %vm202 = vcmask 1042432
    %v204 = vsel %vm202, %v188, 0
    %v207 = vsel %vm202, %v189, 0
    %209 = vmatprep.subr.bf16.mxu0 %v181
    %210 = vmatpush1.bf16.msra.mxu0 %v180
    %211 = vmatprep.subr.bf16.mxu0 %v183
    %212 = vmatpush1.bf16.msra.mxu0 %v182
    %213 = vmatprep.subr.bf16.mxu0 %v185
    %214 = vmatpush1.bf16.msra.mxu0 %v184
    %215 = vmatprep.subr.bf16.mxu0 %v187
    %216 = vmatpush1.bf16.msra.mxu0 %v186
    %217 = vmatprep.subr.bf16.mxu0 %v207
    %218 = vmatpush1.bf16.msra.mxu0 %v204
    %219 = vmatprep.subr.bf16.mxu0 0
    %220 = vmatpush1.bf16.msra.mxu0 0
    %221 = vmatprep.subr.bf16.mxu0 0
    %222 = vmatpush1.bf16.msra.mxu0 0
    %223 = vmatprep.subr.bf16.mxu0 0
    %224 = vmatpush1.bf16.msra.mxu0 0
    %225 = vmatprep.subr.bf16.mxu0 0
    %226 = vmatpush1.bf16.msra.mxu0 0
    %227 = vmatprep.subr.bf16.mxu0 0
    %228 = vmatpush1.bf16.msra.mxu0 0
    %229 = vmatprep.subr.bf16.mxu0 0
    %230 = vmatpush1.bf16.msra.mxu0 0
    %231 = vmatprep.subr.bf16.mxu0 0
    %232 = vmatpush1.bf16.msra.mxu0 0
    %233 = vmatprep.subr.bf16.mxu0 0
    %234 = vmatpush1.bf16.msra.mxu0 0
    %235 = vmatprep.subr.bf16.mxu0 0
    %236 = vmatpush1.bf16.msra.mxu0 0
    %237 = vmatprep.subr.bf16.mxu0 0
    %238 = vmatpush1.bf16.msra.mxu0 0
    %239 = vmatprep.subr.bf16.mxu0 0
    %240 = vmatpush1.bf16.msra.mxu0 0
    %241 = vmatprep.mubr.bf16.mxu0 0
    %242 = vmatmul.mubr.bf16.gmra.mrb[0].mxu0 %v200
    %v243 = vpop.f32.mrb[0].mxu0
    %v244 = vadd.f32 %v146, %v243
    %v245 = vpop.f32.mrb[0].mxu0
    %v246 = vadd.f32 %v150, %v245
    %v247 = vpop.f32.mrb[0].mxu0
    %v248 = vpop.f32.mrb[0].mxu0
    %249 = vdwg.mxu0
    %v250 = vmax.f32 %v244, 0.0
    %v251 = vmax.f32 %v246, 0.0
    %v252 = vpack.c.bf16 %v250, %v250
    %v253 = vpack.c.bf16 %v251, %v251
    %v254 = vld [vmem:[%s4] sm:$0xf]
    %v255 = vld [vmem:[%s4 + $0x4] sm:$0xf]
    %v256 = vld [vmem:[%s4 + $0x8] sm:$0xf]
    %v257 = vld [vmem:[%s4 + $0xc] sm:$0xf]
    %v258 = vld [vmem:[%s4 + $0x10] sm:$0xf]
    %v259 = vld [vmem:[%s4 + $0x14] sm:$0xf]
    %v260 = vld [vmem:[%s4 + $0x18] sm:$0xf]
    %v261 = vld [vmem:[%s4 + $0x1c] sm:$0xf]
    %v262 = vld [vmem:[%s4 + $0x20] sm:$0xf]
    %v263 = vld [vmem:[%s4 + $0x24] sm:$0xf]
    %v264 = vld [vmem:[%s4 + $0x28] sm:$0xf]
    %v265 = vld [vmem:[%s4 + $0x2c] sm:$0xf]
    %v266 = vld [vmem:[%s4 + $0x30] sm:$0xf]
    %v267 = vld [vmem:[%s4 + $0x34] sm:$0xf]
    %v268 = vld [vmem:[%s4 + $0x38] sm:$0xf]
    %v269 = vld [vmem:[%s4 + $0x3c] sm:$0xf]
    %v270 = vld [vmem:[%s4 + $0x40] sm:$0xf]
    %v271 = vld [vmem:[%s4 + $0x44] sm:$0xf]
    %v272 = vld [vmem:[%s4 + $0x48] sm:$0xf]
    %v273 = vld [vmem:[%s4 + $0x4c] sm:$0xf]
    %v274 = vld [vmem:[%s4 + $0x50] sm:$0xf]
    %v275 = vld [vmem:[%s4 + $0x54] sm:$0xf]
    %v276 = vld [vmem:[%s4 + $0x58] sm:$0xf]
    %v277 = vld [vmem:[%s4 + $0x5c] sm:$0xf]
    %v278 = vld [vmem:[#allocation4] sm:$0x1]
    %v280 = vlaneseq
    %v281 = vshrl.u32 %v280, 7
    %v282 = vsub.s32 0, %v281
    %v283 = vrot.slane %v278, %v282
    %v309 = vunpack.c.l.b16 %v254
    %v310 = vunpack.c.l.b16 %v255
    %v311 = vunpack.c.l.b16 %v256
    %v312 = vunpack.c.l.b16 %v257
    %v313 = vunpack.c.l.b16 %v258
    %v314 = vunpack.c.l.b16 %v259
    %v315 = vunpack.c.l.b16 %v260
    %v316 = vunpack.c.l.b16 %v261
    %v317 = vunpack.c.l.b16 %v262
    %v318 = vunpack.c.l.b16 %v263
    %v319 = vunpack.c.l.b16 %v264
    %v320 = vunpack.c.l.b16 %v265
    %v321 = vunpack.c.l.b16 %v266
    %v322 = vunpack.c.l.b16 %v267
    %v323 = vunpack.c.l.b16 %v268
    %v324 = vunpack.c.l.b16 %v269
    %v325 = vunpack.c.l.b16 %v270
    %v326 = vunpack.c.l.b16 %v271
    %v327 = vunpack.c.l.b16 %v272
    %v328 = vunpack.c.l.b16 %v273
    %v329 = vunpack.c.l.b16 %v274
    %v330 = vunpack.c.l.b16 %v275
    %v331 = vunpack.c.l.b16 %v276
    %v332 = vunpack.c.l.b16 %v277
    %v333 = vpack.c.b16 %v310, %v309
    %v334 = vpack.c.b16 %v312, %v311
    %v335 = vpack.c.b16 %v314, %v313
    %v336 = vpack.c.b16 %v316, %v315
    %v337 = vpack.c.b16 %v318, %v317
    %v338 = vpack.c.b16 %v320, %v319
    %v339 = vpack.c.b16 %v322, %v321
    %v340 = vpack.c.b16 %v324, %v323
    %v341 = vpack.c.b16 %v326, %v325
    %v342 = vpack.c.b16 %v328, %v327
    %v343 = vpack.c.b16 %v330, %v329
    %v344 = vpack.c.b16 %v332, %v331
    %vm357 = vcmask 523264
    %v359 = vsel %vm357, %v253, 0
    %361 = vmatprep.subr.bf16.mxu0 0
    %362 = vmatpush1.bf16.msra.mxu0 %v333
    %363 = vmatprep.subr.bf16.mxu0 0
    %364 = vmatpush1.bf16.msra.mxu0 %v334
    %365 = vmatprep.subr.bf16.mxu0 0
    %366 = vmatpush1.bf16.msra.mxu0 %v335
    %367 = vmatprep.subr.bf16.mxu0 0
    %368 = vmatpush1.bf16.msra.mxu0 %v336
    %369 = vmatprep.subr.bf16.mxu0 0
    %370 = vmatpush1.bf16.msra.mxu0 %v337
    %371 = vmatprep.subr.bf16.mxu0 0
    %372 = vmatpush1.bf16.msra.mxu0 %v338
    %373 = vmatprep.subr.bf16.mxu0 0
    %374 = vmatpush1.bf16.msra.mxu0 %v339
    %375 = vmatprep.subr.bf16.mxu0 0
    %376 = vmatpush1.bf16.msra.mxu0 %v340
    %377 = vmatprep.subr.bf16.mxu0 0
    %378 = vmatpush1.bf16.msra.mxu0 %v341
    %379 = vmatprep.subr.bf16.mxu0 0
    %380 = vmatpush1.bf16.msra.mxu0 %v342
    %381 = vmatprep.subr.bf16.mxu0 0
    %382 = vmatpush1.bf16.msra.mxu0 %v343
    %383 = vmatprep.subr.bf16.mxu0 0
    %384 = vmatpush1.bf16.msra.mxu0 %v344
    %385 = vmatprep.subr.bf16.mxu0 0
    %386 = vmatpush1.bf16.msra.mxu0 0
    %387 = vmatprep.subr.bf16.mxu0 0
    %388 = vmatpush1.bf16.msra.mxu0 0
    %389 = vmatprep.subr.bf16.mxu0 0
    %390 = vmatpush1.bf16.msra.mxu0 0
    %391 = vmatprep.subr.bf16.mxu0 0
    %392 = vmatpush1.bf16.msra.mxu0 0
    %393 = vmatprep.mubr.bf16.mxu0 %v359
    %394 = vmatmul.mubr.bf16.gmra.mrb[0].mxu0 %v252
    %v395 = vpop.f32.mrb[0].mxu0
    %v396 = vadd.f32 %v283, %v395
    %v397 = vpop.f32.mrb[0].mxu0
    %v398 = vpop.f32.mrb[0].mxu0
    %v399 = vpop.f32.mrb[0].mxu0
    %400 = vdwg.mxu0
    %v401 = vmax.f32 %v396, 0.0
    %v402 = vld [vmem:[%s1] sm:$0x3]
    %v403 = vlaneseq
    %v404 = vshrl.u32 %v403, 7
    %v405 = vsub.s32 0, %v404
    %v406 = vrot.slane %v402, %v405
    %408 = vrot.lane.b32.xlu0 %v406, 64
    %v409 = vpop.permute.xlu0 %408
    %v411 = vadd.f32 %v246, %v409
    %v412 = vlaneseq
    %v413 = vshrl.u32 %v412, 7
    %v414 = vsub.s32 1, %v413
    %v415 = vrot.slane %v402, %v414
    %417 = vrot.lane.b32.xlu0 %v415, 64
    %v418 = vpop.permute.xlu0 %417
    %v420 = vadd.f32 %v246, %v418
    %vm421 = vcmask 548352
    %v422 = vsel %vm421, %v411, -inf
    %423 = vmax.xlane.f32.xlu0 %v422
    %v424 = vpop.xlane.xlu0 %423
    %v425 = vsel %vm421, %v420, -inf
    %426 = vmax.xlane.f32.xlu0 %v425
    %v427 = vpop.xlane.xlu0 %426
    %v428 = vsub.f32 %v411, %v424
    %v429 = vsub.f32 %v420, %v427
    %v430 = vmul.f32 %v428, 1.442695
    %v431 = vpow.pop %v430
    %v432 = vmul.f32 %v429, 1.442695
    %v433 = vpow.pop %v432
    %436 = vrot.lane.b32.xlu0 %v431, 64
    %v437 = vpop.permute.xlu0 %436
    %438 = vrot.lane.b32.xlu0 %v433, 64
    %v439 = vpop.permute.xlu0 %438
    %vm442 = vcmask 23552
    %v443 = vsel %vm442, %v437, 0.0
    %444 = vadd.xlane.f32.xlu0 %v443
    %v445 = vpop.xlane.xlu0 %444
    %v446 = vsel %vm442, %v439, 0.0
    %447 = vadd.xlane.f32.xlu0 %v446
    %v448 = vpop.xlane.xlu0 %447
    %v449 = vrcp.pop %v445
    %v450 = vmul.f32 %v431, %v449
    %v451 = vrcp.pop %v448
    %v452 = vmul.f32 %v433, %v451
    %vm453 = vcmask 564760
    %v454 = vsel %vm453, %v411, -inf
    %455 = vmax.xlane.f32.xlu0 %v454
    %v456 = vpop.xlane.xlu0 %455
    %v457 = vsel %vm453, %v420, -inf
    %458 = vmax.xlane.f32.xlu0 %v457
    %v459 = vpop.xlane.xlu0 %458
    %v460 = vsub.f32 %v411, %v456
    %v461 = vsub.f32 %v420, %v459
    %v462 = vmul.f32 %v460, 1.442695
    %v463 = vpow.pop %v462
    %v464 = vmul.f32 %v461, 1.442695
    %v465 = vpow.pop %v464
    %468 = vrot.lane.b32.xlu0 %v463, 61
    %v469 = vpop.permute.xlu0 %468
    %470 = vrot.lane.b32.xlu0 %v465, 61
    %v471 = vpop.permute.xlu0 %470
    %vm474 = vcmask 15360
    %v475 = vsel %vm474, %v469, 0.0
    %476 = vadd.xlane.f32.xlu0 %v475
    %v477 = vpop.xlane.xlu0 %476
    %v478 = vsel %vm474, %v471, 0.0
    %479 = vadd.xlane.f32.xlu0 %v478
    %v480 = vpop.xlane.xlu0 %479
    %v481 = vrcp.pop %v477
    %v482 = vmul.f32 %v463, %v481
    %v483 = vrcp.pop %v480
    %v484 = vmul.f32 %v465, %v483
    %v485 = vld [vmem:[#allocation6] sm:$0x7]
    %488 = vrot.lane.b32.xlu0 %v450, 64
    %v489 = vpop.permute.xlu0 %488
    %490 = vrot.lane.b32.xlu0 %v452, 64
    %v491 = vpop.permute.xlu0 %490
    %v492 = vsel %vm442, %v489, 0
    %v494 = vsel %vm442, %v491, 0
    %v497 = vsel %vm202, %v485, 0
    %499 = vmatprep.subr.mxu0 0.0
    %500 = vmatpush1.msra.mxu0 %v497
    %501 = vmatprep.subr.mxu0 0.0
    %502 = vmatpush1.msra.mxu0 0.0
    %503 = vmatprep.subr.mxu0 0.0
    %504 = vmatpush1.msra.mxu0 0.0
    %505 = vmatprep.subr.mxu0 0.0
    %506 = vmatpush1.msra.mxu0 0.0
    %507 = vmatprep.subr.mxu0 0.0
    %508 = vmatpush1.msra.mxu0 0.0
    %509 = vmatprep.subr.mxu0 0.0
    %510 = vmatpush1.msra.mxu0 0.0
    %511 = vmatprep.subr.mxu0 0.0
    %512 = vmatpush1.msra.mxu0 0.0
    %513 = vmatprep.subr.mxu0 0.0
    %514 = vmatpush1.msra.mxu0 0.0
    %515 = vmatprep.subr.mxu0 0.0
    %516 = vmatpush1.msra.mxu0 0.0
    %517 = vmatprep.subr.mxu0 0.0
    %518 = vmatpush1.msra.mxu0 0.0
    %519 = vmatprep.subr.mxu0 0.0
    %520 = vmatpush1.msra.mxu0 0.0
    %521 = vmatprep.subr.mxu0 0.0
    %522 = vmatpush1.msra.mxu0 0.0
    %523 = vmatprep.subr.mxu0 0.0
    %524 = vmatpush1.msra.mxu0 0.0
    %525 = vmatprep.subr.mxu0 0.0
    %526 = vmatpush1.msra.mxu0 0.0
    %527 = vmatprep.subr.mxu0 0.0
    %528 = vmatpush1.msra.mxu0 0.0
    %529 = vmatprep.subr.mxu0 0.0
    %530 = vmatpush1.msra.mxu0 0.0
    %531 = vmatprep.subr.mxu0 0.0
    %532 = vmatpush1.msra.mxu0 0.0
    %533 = vmatprep.subr.mxu0 0.0
    %534 = vmatpush1.msra.mxu0 0.0
    %535 = vmatprep.subr.mxu0 0.0
    %536 = vmatpush1.msra.mxu0 0.0
    %537 = vmatprep.subr.mxu0 0.0
    %538 = vmatpush1.msra.mxu0 0.0
    %539 = vmatprep.subr.mxu0 0.0
    %540 = vmatpush1.msra.mxu0 0.0
    %541 = vmatprep.subr.mxu0 0.0
    %542 = vmatpush1.msra.mxu0 0.0
    %543 = vmatprep.subr.mxu0 0.0
    %544 = vmatpush1.msra.mxu0 0.0
    %545 = vmatprep.subr.mxu0 0.0
    %546 = vmatpush1.msra.mxu0 0.0
    %547 = vmatprep.subr.mxu0 0.0
    %548 = vmatpush1.msra.mxu0 0.0
    %549 = vmatprep.subr.mxu0 0.0
    %550 = vmatpush1.msra.mxu0 0.0
    %551 = vmatprep.subr.mxu0 0.0
    %552 = vmatpush1.msra.mxu0 0.0
    %553 = vmatprep.subr.mxu0 0.0
    %554 = vmatpush1.msra.mxu0 0.0
    %555 = vmatprep.subr.mxu0 0.0
    %556 = vmatpush1.msra.mxu0 0.0
    %557 = vmatprep.subr.mxu0 0.0
    %558 = vmatpush1.msra.mxu0 0.0
    %559 = vmatprep.subr.mxu0 0.0
    %560 = vmatpush1.msra.mxu0 0.0
    %561 = vmatprep.subr.mxu0 0.0
    %562 = vmatpush1.msra.mxu0 0.0
    %563 = vmatprep.mubr.f32.mxu0 0.0
    %564 = vmatmul.mubr.f32.gmra.mrb[0].mxu0 %v492
    %v565 = vpop.f32.mrb[0].mxu0
    %v566 = vadd.f32 0.0, %v565
    %v567 = vpop.f32.mrb[0].mxu0
    %568 = vmatprep.mubr.f32.mxu0 0.0
    %569 = vmatmul.mubr.f32.gmra.mrb[0].mxu0 %v494
    %v570 = vpop.f32.mrb[0].mxu0
    %v571 = vadd.f32 0.0, %v570
    %v572 = vpop.f32.mrb[0].mxu0
    %573 = vdwg.mxu0
    %v574 = vmul.f32 %v566, %v401
    %v575 = vmul.f32 %v571, %v401
    %v576 = vld [vmem:[%s7] sm:$0xff]
    %v577 = vld [vmem:[%s7 + $0x8] sm:$0xff]
    %v578 = vld [vmem:[%s7 + $0x10] sm:$0xff]
    %v579 = vld [vmem:[%s7 + $0x18] sm:$0xff]
    %v580 = vld [vmem:[%s7 + $0x20] sm:$0xff]
    %v581 = vld [vmem:[%s7 + $0x28] sm:$0xff]
    %v582 = vld [vmem:[%s7 + $0x30] sm:$0xff]
    %v583 = vld [vmem:[%s7 + $0x38] sm:$0xff]
    %v584 = vld [vmem:[%s7 + $0x40] sm:$0xff]
    %v585 = vld [vmem:[%s7 + $0x48] sm:$0xff]
    %v586 = vld [vmem:[%s7 + $0x50] sm:$0xff]
    %v587 = vld [vmem:[%s7 + $0x58] sm:$0xff]
    %vm588 = vcmask 785408
    %v590 = vsel %vm588, %v574, 0
    %v593 = vsel %vm588, %v575, 0
    %595 = vmatprep.subr.mxu0 0.0
    %596 = vmatpush1.msra.mxu0 %v576
    %597 = vmatprep.subr.mxu0 0.0
    %598 = vmatpush1.msra.mxu0 %v577
    %599 = vmatprep.subr.mxu0 0.0
    %600 = vmatpush1.msra.mxu0 %v578
    %601 = vmatprep.subr.mxu0 0.0
    %602 = vmatpush1.msra.mxu0 %v579
    %603 = vmatprep.subr.mxu0 0.0
    %604 = vmatpush1.msra.mxu0 %v580
    %605 = vmatprep.subr.mxu0 0.0
    %606 = vmatpush1.msra.mxu0 %v581
    %607 = vmatprep.subr.mxu0 0.0
    %608 = vmatpush1.msra.mxu0 %v582
    %609 = vmatprep.subr.mxu0 0.0
    %610 = vmatpush1.msra.mxu0 %v583
    %611 = vmatprep.subr.mxu0 0.0
    %612 = vmatpush1.msra.mxu0 %v584
    %613 = vmatprep.subr.mxu0 0.0
    %614 = vmatpush1.msra.mxu0 %v585
    %615 = vmatprep.subr.mxu0 0.0
    %616 = vmatpush1.msra.mxu0 %v586
    %617 = vmatprep.subr.mxu0 0.0
    %618 = vmatpush1.msra.mxu0 %v587
    %619 = vmatprep.subr.mxu0 0.0
    %620 = vmatpush1.msra.mxu0 0.0
    %621 = vmatprep.subr.mxu0 0.0
    %622 = vmatpush1.msra.mxu0 0.0
    %623 = vmatprep.subr.mxu0 0.0
    %624 = vmatpush1.msra.mxu0 0.0
    %625 = vmatprep.subr.mxu0 0.0
    %626 = vmatpush1.msra.mxu0 0.0
    %627 = vmatprep.subr.mxu0 0.0
    %628 = vmatpush1.msra.mxu0 0.0
    %629 = vmatprep.subr.mxu0 0.0
    %630 = vmatpush1.msra.mxu0 0.0
    %631 = vmatprep.subr.mxu0 0.0
    %632 = vmatpush1.msra.mxu0 0.0
    %633 = vmatprep.subr.mxu0 0.0
    %634 = vmatpush1.msra.mxu0 0.0
    %635 = vmatprep.subr.mxu0 0.0
    %636 = vmatpush1.msra.mxu0 0.0
    %637 = vmatprep.subr.mxu0 0.0
    %638 = vmatpush1.msra.mxu0 0.0
    %639 = vmatprep.subr.mxu0 0.0
    %640 = vmatpush1.msra.mxu0 0.0
    %641 = vmatprep.subr.mxu0 0.0
    %642 = vmatpush1.msra.mxu0 0.0
    %643 = vmatprep.subr.mxu0 0.0
    %644 = vmatpush1.msra.mxu0 0.0
    %645 = vmatprep.subr.mxu0 0.0
    %646 = vmatpush1.msra.mxu0 0.0
    %647 = vmatprep.subr.mxu0 0.0
    %648 = vmatpush1.msra.mxu0 0.0
    %649 = vmatprep.subr.mxu0 0.0
    %650 = vmatpush1.msra.mxu0 0.0
    %651 = vmatprep.subr.mxu0 0.0
    %652 = vmatpush1.msra.mxu0 0.0
    %653 = vmatprep.subr.mxu0 0.0
    %654 = vmatpush1.msra.mxu0 0.0
    %655 = vmatprep.subr.mxu0 0.0
    %656 = vmatpush1.msra.mxu0 0.0
    %657 = vmatprep.subr.mxu0 0.0
    %658 = vmatpush1.msra.mxu0 0.0
    %659 = vmatprep.mubr.f32.mxu0 0.0
    %660 = vmatmul.mubr.f32.gmra.mrb[0].mxu0 %v590
    %v661 = vpop.f32.mrb[0].mxu0
    %v662 = vadd.f32 0.0, %v661
    %v663 = vpop.f32.mrb[0].mxu0
    %664 = vmatprep.mubr.f32.mxu0 0.0
    %665 = vmatmul.mubr.f32.gmra.mrb[0].mxu0 %v593
    %v666 = vpop.f32.mrb[0].mxu0
    %v667 = vadd.f32 0.0, %v666
    %v668 = vpop.f32.mrb[0].mxu0
    %669 = vdwg.mxu0
    %v670 = vpack.c.bf16 %v667, %v662
    %v671 = vld [vmem:[%s8] sm:$0xf]
    %v672 = vld [vmem:[%s8 + $0x4] sm:$0xf]
    %v673 = vld [vmem:[%s8 + $0x8] sm:$0xf]
    %v674 = vld [vmem:[%s8 + $0xc] sm:$0xf]
    %v675 = vld [vmem:[#allocation7] sm:$0x1]
    %v677 = vlaneseq
    %v678 = vshrl.u32 %v677, 7
    %v679 = vsub.s32 0, %v678
    %v680 = vrot.slane %v675, %v679
    %v686 = vunpack.c.l.b16 %v671
    %v687 = vunpack.c.l.b16 %v672
    %v688 = vunpack.c.l.b16 %v673
    %v689 = vunpack.c.l.b16 %v674
    %v690 = vpack.c.b16 %v687, %v686
    %v691 = vpack.c.b16 %v689, %v688
    %vm694 = vcmask 261120
    %v696 = vsel %vm694, %v670, 0
    %698 = vmatprep.subr.bf16.mxu0 0
    %699 = vmatpush1.bf16.msra.mxu0 %v690
    %700 = vmatprep.subr.bf16.mxu0 0
    %701 = vmatpush1.bf16.msra.mxu0 %v691
    %702 = vmatprep.subr.bf16.mxu0 0
    %703 = vmatpush1.bf16.msra.mxu0 0
    %704 = vmatprep.subr.bf16.mxu0 0
    %705 = vmatpush1.bf16.msra.mxu0 0
    %706 = vmatprep.subr.bf16.mxu0 0
    %707 = vmatpush1.bf16.msra.mxu0 0
    %708 = vmatprep.subr.bf16.mxu0 0
    %709 = vmatpush1.bf16.msra.mxu0 0
    %710 = vmatprep.subr.bf16.mxu0 0
    %711 = vmatpush1.bf16.msra.mxu0 0
    %712 = vmatprep.subr.bf16.mxu0 0
    %713 = vmatpush1.bf16.msra.mxu0 0
    %714 = vmatprep.subr.bf16.mxu0 0
    %715 = vmatpush1.bf16.msra.mxu0 0
    %716 = vmatprep.subr.bf16.mxu0 0
    %717 = vmatpush1.bf16.msra.mxu0 0
    %718 = vmatprep.subr.bf16.mxu0 0
    %719 = vmatpush1.bf16.msra.mxu0 0
    %720 = vmatprep.subr.bf16.mxu0 0
    %721 = vmatpush1.bf16.msra.mxu0 0
    %722 = vmatprep.subr.bf16.mxu0 0
    %723 = vmatpush1.bf16.msra.mxu0 0
    %724 = vmatprep.subr.bf16.mxu0 0
    %725 = vmatpush1.bf16.msra.mxu0 0
    %726 = vmatprep.subr.bf16.mxu0 0
    %727 = vmatpush1.bf16.msra.mxu0 0
    %728 = vmatprep.subr.bf16.mxu0 0
    %729 = vmatpush1.bf16.msra.mxu0 0
    %730 = vmatprep.mubr.bf16.mxu0 0
    %731 = vmatmul.mubr.bf16.gmra.mrb[0].mxu0 %v696
    %v732 = vpop.f32.mrb[0].mxu0
    %v733 = vadd.f32 %v680, %v732
    %v734 = vpop.f32.mrb[0].mxu0
    %v735 = vpop.f32.mrb[0].mxu0
    %v736 = vadd.f32 %v680, %v735
    %v737 = vpop.f32.mrb[0].mxu0
    %738 = vdwg.mxu0
    %v739 = vmax.f32 %v733, 0.0
    %v740 = vmax.f32 %v736, 0.0
    %v741 = vpack.c.bf16 %v740, %v739
    %v742 = vld [vmem:[%s10] sm:$0xf]
    %v743 = vld [vmem:[%s10 + $0x4] sm:$0xf]
    %v744 = vld [vmem:[%s10 + $0x8] sm:$0xf]
    %v745 = vld [vmem:[%s10 + $0xc] sm:$0xf]
    %v746 = vld [vmem:[%s10 + $0x10] sm:$0xf]
    %v747 = vld [vmem:[%s10 + $0x14] sm:$0xf]
    %v748 = vld [vmem:[%s10 + $0x18] sm:$0xf]
    %v749 = vld [vmem:[%s10 + $0x1c] sm:$0xf]
    %v750 = vld [vmem:[#allocation9] sm:$0x1]
    %v752 = vlaneseq
    %v753 = vshrl.u32 %v752, 7
    %v754 = vsub.s32 0, %v753
    %v755 = vrot.slane %v750, %v754
    %v765 = vunpack.c.l.b16 %v742
    %v766 = vunpack.c.l.b16 %v743
    %v767 = vunpack.c.l.b16 %v744
    %v768 = vunpack.c.l.b16 %v745
    %v769 = vunpack.c.l.b16 %v746
    %v770 = vunpack.c.l.b16 %v747
    %v771 = vunpack.c.l.b16 %v748
    %v772 = vunpack.c.l.b16 %v749
    %v773 = vpack.c.b16 %v766, %v765
    %v774 = vpack.c.b16 %v768, %v767
    %v775 = vpack.c.b16 %v770, %v769
    %v776 = vpack.c.b16 %v772, %v771
    %v782 = vsel %vm357, %v741, 0
    %784 = vmatprep.subr.bf16.mxu0 0
    %785 = vmatpush1.bf16.msra.mxu0 %v773
    %786 = vmatprep.subr.bf16.mxu0 0
    %787 = vmatpush1.bf16.msra.mxu0 %v774
    %788 = vmatprep.subr.bf16.mxu0 0
    %789 = vmatpush1.bf16.msra.mxu0 %v775
    %790 = vmatprep.subr.bf16.mxu0 0
    %791 = vmatpush1.bf16.msra.mxu0 %v776
    %792 = vmatprep.subr.bf16.mxu0 0
    %793 = vmatpush1.bf16.msra.mxu0 0
    %794 = vmatprep.subr.bf16.mxu0 0
    %795 = vmatpush1.bf16.msra.mxu0 0
    %796 = vmatprep.subr.bf16.mxu0 0
    %797 = vmatpush1.bf16.msra.mxu0 0
    %798 = vmatprep.subr.bf16.mxu0 0
    %799 = vmatpush1.bf16.msra.mxu0 0
    %800 = vmatprep.subr.bf16.mxu0 0
    %801 = vmatpush1.bf16.msra.mxu0 0
    %802 = vmatprep.subr.bf16.mxu0 0
    %803 = vmatpush1.bf16.msra.mxu0 0
    %804 = vmatprep.subr.bf16.mxu0 0
    %805 = vmatpush1.bf16.msra.mxu0 0
    %806 = vmatprep.subr.bf16.mxu0 0
    %807 = vmatpush1.bf16.msra.mxu0 0
    %808 = vmatprep.subr.bf16.mxu0 0
    %809 = vmatpush1.bf16.msra.mxu0 0
    %810 = vmatprep.subr.bf16.mxu0 0
    %811 = vmatpush1.bf16.msra.mxu0 0
    %812 = vmatprep.subr.bf16.mxu0 0
    %813 = vmatpush1.bf16.msra.mxu0 0
    %814 = vmatprep.subr.bf16.mxu0 0
    %815 = vmatpush1.bf16.msra.mxu0 0
    %816 = vmatprep.mubr.bf16.mxu0 0
    %817 = vmatmul.mubr.bf16.gmra.mrb[0].mxu0 %v782
    %v818 = vpop.f32.mrb[0].mxu0
    %v819 = vadd.f32 %v755, %v818
    %v820 = vpop.f32.mrb[0].mxu0
    %v821 = vpop.f32.mrb[0].mxu0
    %v822 = vadd.f32 %v755, %v821
    %v823 = vpop.f32.mrb[0].mxu0
    %824 = vdwg.mxu0
    %v825 = vmax.f32 %v819, 0.0
    %v826 = vmax.f32 %v822, 0.0
    %v827 = vpack.c.bf16 %v826, %v825
    %v828 = vld [vmem:[#allocation10] sm:$0xf]
    %v829 = vld [vmem:[#allocation10 + $0x4] sm:$0xf]
    %v830 = vld [vmem:[#allocation10 + $0x8] sm:$0xf]
    %v831 = vld [vmem:[#allocation10 + $0xc] sm:$0xf]
    %v832 = vld [vmem:[#allocation12] sm:$0x1]
    %v834 = vlaneseq
    %v835 = vshrl.u32 %v834, 7
    %v836 = vsub.s32 0, %v835
    %v837 = vrot.slane %v832, %v836
    %v843 = vunpack.c.l.b16 %v828
    %v844 = vunpack.c.l.b16 %v829
    %v845 = vunpack.c.l.b16 %v830
    %v846 = vunpack.c.l.b16 %v831
    %v847 = vpack.c.b16 %v844, %v843
    %v848 = vpack.c.b16 %v846, %v845
    %v852 = vsel %vm694, %v827, 0
    %854 = vmatprep.subr.bf16.mxu0 0
    %855 = vmatpush1.bf16.msra.mxu0 %v847
    %856 = vmatprep.subr.bf16.mxu0 0
    %857 = vmatpush1.bf16.msra.mxu0 %v848
    %858 = vmatprep.subr.bf16.mxu0 0
    %859 = vmatpush1.bf16.msra.mxu0 0
    %860 = vmatprep.subr.bf16.mxu0 0
    %861 = vmatpush1.bf16.msra.mxu0 0
    %862 = vmatprep.subr.bf16.mxu0 0
    %863 = vmatpush1.bf16.msra.mxu0 0
    %864 = vmatprep.subr.bf16.mxu0 0
    %865 = vmatpush1.bf16.msra.mxu0 0
    %866 = vmatprep.subr.bf16.mxu0 0
    %867 = vmatpush1.bf16.msra.mxu0 0
    %868 = vmatprep.subr.bf16.mxu0 0
    %869 = vmatpush1.bf16.msra.mxu0 0
    %870 = vmatprep.subr.bf16.mxu0 0
    %871 = vmatpush1.bf16.msra.mxu0 0
    %872 = vmatprep.subr.bf16.mxu0 0
    %873 = vmatpush1.bf16.msra.mxu0 0
    %874 = vmatprep.subr.bf16.mxu0 0
    %875 = vmatpush1.bf16.msra.mxu0 0
    %876 = vmatprep.subr.bf16.mxu0 0
    %877 = vmatpush1.bf16.msra.mxu0 0
    %878 = vmatprep.subr.bf16.mxu0 0
    %879 = vmatpush1.bf16.msra.mxu0 0
    %880 = vmatprep.subr.bf16.mxu0 0
    %881 = vmatpush1.bf16.msra.mxu0 0
    %882 = vmatprep.subr.bf16.mxu0 0
    %883 = vmatpush1.bf16.msra.mxu0 0
    %884 = vmatprep.subr.bf16.mxu0 0
    %885 = vmatpush1.bf16.msra.mxu0 0
    %886 = vmatprep.mubr.bf16.mxu0 0
    %887 = vmatmul.mubr.bf16.gmra.mrb[0].mxu0 %v852
    %v888 = vpop.f32.mrb[0].mxu0
    %v889 = vadd.f32 %v837, %v888
    %v890 = vpop.f32.mrb[0].mxu0
    %v891 = vpop.f32.mrb[0].mxu0
    %v892 = vadd.f32 %v837, %v891
    %v893 = vpop.f32.mrb[0].mxu0
    %894 = vdwg.mxu0
    %v895 = vxor.u32 %v889, 2147483648
    %v896 = vxor.u32 %v892, 2147483648
    %v897 = vmul.f32 %v895, 1.442695
    %v898 = vpow.pop %v897
    %v899 = vmul.f32 %v896, 1.442695
    %v900 = vpow.pop %v899
    %v901 = vadd.f32 %v898, 1.0
    %v902 = vadd.f32 %v900, 1.0
    %v903 = vrcp.pop %v901
    %v904 = vmul.f32 1.0, %v903
    %v905 = vrcp.pop %v902
    %v906 = vmul.f32 1.0, %v905
    %909 = vrot.lane.b32.xlu0 %v904, 67
    %v910 = vpop.permute.xlu0 %909
    %911 = vrot.lane.b32.xlu0 %v906, 67
    %v912 = vpop.permute.xlu0 %911
    %v915 = vmul.f32 %v482, %v910
    %v916 = vmul.f32 %v484, %v912
    %919 = vrot.lane.b32.xlu0 %v915, 61
    %v920 = vpop.permute.xlu0 %919
    %921 = vrot.lane.b32.xlu0 %v916, 61
    %v922 = vpop.permute.xlu0 %921
    %v925 = vsel %vm474, %v920, 0.0
    %926 = vadd.xlane.f32.xlu0 %v925
    %v927 = vpop.xlane.xlu0 %926
    %v928 = vsel %vm474, %v922, 0.0
    %929 = vadd.xlane.f32.xlu0 %v928
    %v930 = vpop.xlane.xlu0 %929
    %v931 = vmul.f32 %v927, 0.5
    %v932 = vmul.f32 %v930, 0.5
    %vm933 = vcmask 7168
    %v934 = vsel %vm933, %v931, %v932
    %v935 = vsel %vm474, %v934, 0.0
    %vm936 = vcmask 64512
    %937 = vst.msk [vmem:[%s14] sm:$0xff] %vm936, %v935
    // Predicated region
    $region86: #{_forward_impl.1} parent=1 // pred_check
      _
    $region87: #{_forward_impl.1} parent=1 // pred_check_branch
      %939 = sbr.rel (0) target = $region89
    $region88: #{_forward_impl.1} parent=1 // pred_region
      _
    $region89: #{_forward_impl.1} parent=1 // pred_fallthru
      _
    // Predicated region
    $region90: #{_forward_impl.1} parent=1 // pred_check
      _
    $region91: #{_forward_impl.1} parent=1 // pred_check_branch
      %941 = sbr.rel (0) target = $region93
    $region92: #{_forward_impl.1} parent=1 // pred_region
      _
    $region93: #{_forward_impl.1} parent=1 // pred_fallthru
      _
    %942 = vsyncpa [#allocation3], 1
    %943 = vsyncpa [#allocation5], 1
    %944 = vsyncpa [#allocation8], 1
    %945 = vsyncpa [#allocation11], 1

</llo_original>
